<compile_context>
chip_gen: v6e
topology: v6e:2x2x1
jax: 0.10.0
libtpu: 0.0.40
codegen_flags: <defaults>
</compile_context>

<pallas_src>
import functools
import math

import jax
import jax.numpy as jnp
from jax.experimental import pallas as pl
from jax.experimental.pallas import tpu as pltpu


def _round_up(x, m):
    return ((x + m - 1) // m) * m


# ----------------------------------------------------------------------------
# Kernel
# ----------------------------------------------------------------------------
def graph_predictor_kernel(gf_ref, bf_ref, w_ref, b_ref, out_ref, *, cfg):
    f32 = jnp.float32
    bf16 = jnp.bfloat16

    flat_p = cfg["flat_p"]
    rep_p = cfg["rep_p"]
    cg_p = cfg["cg_p"]
    d_p = cfg["d_p"]
    out_p = cfg["out_p"]
    off = cfg["off"]

    x = bf_ref[...]                      # [Np, FLAT_p] f32 raw flattened box feats
    xh = x.astype(bf16)
    gfh = gf_ref[...].astype(bf16)       # [Np, CG_p]
    b = b_ref[...]                       # [8, LW] f32 packed biases

    # ---- box_head (TwoMLPHead): fc6 -> ReLU -> fc7 -> ReLU -------------------
    w6 = w_ref[off["w6"]:off["w6"] + flat_p, :rep_p]
    h = jnp.dot(xh, w6, preferred_element_type=f32) + b[0:1, :rep_p]
    h = jnp.maximum(h, 0.0)

    w7 = w_ref[off["w7"]:off["w7"] + rep_p, :rep_p]
    feat = jnp.dot(h.astype(bf16), w7, preferred_element_type=f32) + b[1:2, :rep_p]
    feat = jnp.maximum(feat, 0.0)        # [Np, REP_p]

    # ---- MEFARG-style graph head over the num_node boxes ---------------------
    wg = w_ref[off["wg"]:off["wg"] + flat_p, :d_p]
    u = jnp.dot(xh, wg, preferred_element_type=f32) + b[2:3, :d_p]
    u = jnp.maximum(u, 0.0)              # node features   [Np, D_p]

    wgl = w_ref[off["wgl"]:off["wgl"] + cg_p, :d_p]
    g = jnp.dot(gfh, wgl, preferred_element_type=f32) + b[3:4, :d_p]
    g = jnp.maximum(g, 0.0)              # global features [Np, D_p]

    # adjacency = row-softmax(u u^T / sqrt(d)); contract shared last dim directly
    uh = u.astype(bf16)
    logits = jax.lax.dot_general(
        uh, uh, (((1,), (1,)), ((), ())), preferred_element_type=f32
    ) * cfg["inv_sqrt_d"]
    if cfg["n_pad"] > cfg["n_real"]:     # static: mask dummy padded node columns
        col = jax.lax.broadcasted_iota(jnp.int32, logits.shape, 1)
        logits = jnp.where(col < cfg["n_real"], logits, -1e30)
    logits = logits - jnp.max(logits, axis=-1, keepdims=True)
    p = jnp.exp(logits)
    adj = p * pl.reciprocal(jnp.sum(p, axis=-1, keepdims=True), approx=True)

    # one message-passing step with residual + ReLU
    wmp = w_ref[off["wmp"]:off["wmp"] + d_p, :d_p]
    um = jnp.dot(uh, wmp, preferred_element_type=f32)
    msg = jnp.dot(adj.astype(bf16), um.astype(bf16), preferred_element_type=f32)
    v = jnp.maximum(msg + u, 0.0)

    # ---- fused heads: one lane-dense store [scores | bbox_deltas | 0-pad] ----
    wcls = w_ref[off["wcls"]:off["wcls"] + d_p, :out_p]   # scores cols [0, nc)
    wb = w_ref[off["wb"]:off["wb"] + rep_p, :out_p]       # bbox   cols [nc, 5*nc)
    out_ref[...] = (
        jnp.dot((v + g).astype(bf16), wcls, preferred_element_type=f32)
        + jnp.dot(feat.astype(bf16), wb, preferred_element_type=f32)
        + b[4:5, :out_p]
    )


# ----------------------------------------------------------------------------
# Parameter packing (lane-pad to 128, fuse the two output heads, 2 arrays total)
# ----------------------------------------------------------------------------
def _pack_params(params, num_classes):
    w6, w7, wb = params["w6"], params["w7"], params["wb"]
    wg, wgl, wmp, wcls = params["wg"], params["wgl"], params["wmp"], params["wcls"]
    b6, b7, bb = params["b6"], params["b7"], params["bb"]
    bg, bgl, bcls = params["bg"], params["bgl"], params["bcls"]

    flat, rep = w6.shape
    d = wmp.shape[0]
    cg = wgl.shape[0]
    nc = num_classes

    flat_p = _round_up(flat, 128)
    rep_p = _round_up(rep, 128)
    d_p = _round_up(d, 128)
    cg_p = _round_up(cg, 128)
    out_p = _round_up(5 * nc, 128)       # merged [scores | bbox] output width
    lw = max(rep_p, d_p, out_p)          # common lane width of the packed slab

    def pad_w(w, rows_p, col_off=0):
        r, c = w.shape
        return jnp.pad(w, ((0, rows_p - r), (col_off, lw - col_off - c)))

    pieces = [
        ("w6", pad_w(w6, flat_p)),
        ("w7", pad_w(w7, rep_p)),
        ("wg", pad_w(wg, flat_p)),
        ("wgl", pad_w(wgl, cg_p)),
        ("wmp", pad_w(wmp, d_p)),
        ("wcls", pad_w(wcls, d_p)),           # -> output cols [0, nc)
        ("wb", pad_w(wb, rep_p, col_off=nc)),  # -> output cols [nc, 5*nc)
    ]
    off, blocks, rows = {}, [], 0
    for name, arr in pieces:
        off[name] = rows
        rows += arr.shape[0]
        blocks.append(arr)
    w_packed = jnp.concatenate(blocks, axis=0).astype(jnp.bfloat16)

    def pad_b(v):
        return jnp.pad(v, (0, lw - v.shape[0]))

    b_out = jnp.concatenate([bcls, bb])        # merged output bias
    zeros = jnp.zeros((lw,), jnp.float32)
    b_packed = jnp.stack(
        [pad_b(b6), pad_b(b7), pad_b(bg), pad_b(bgl), pad_b(b_out), zeros, zeros, zeros]
    ).astype(jnp.float32)                      # [8, LW]

    cfg = dict(flat_p=flat_p, rep_p=rep_p, d_p=d_p, cg_p=cg_p, out_p=out_p,
               off=off, inv_sqrt_d=1.0 / math.sqrt(d), nc=nc)
    return w_packed, b_packed, cfg


# ----------------------------------------------------------------------------
# Wrapper
# ----------------------------------------------------------------------------
def graph_predictor(global_features, box_features, params):
    """Returns (scores [N, num_classes], bbox_deltas [N, 4*num_classes])."""
    n = box_features.shape[0]
    nc = params["wcls"].shape[1]
    bf_flat = box_features.reshape(n, -1)      # == torch.flatten(start_dim=1) on NCHW

    w_packed, b_packed, cfg = _pack_params(params, nc)
    n_pad = _round_up(max(n, 8), 8)
    cfg["n_real"] = n
    cfg["n_pad"] = n_pad

    gf_p = jnp.pad(global_features.astype(jnp.float32),
                   ((0, n_pad - n), (0, cfg["cg_p"] - global_features.shape[1])))
    bf_p = jnp.pad(bf_flat.astype(jnp.float32),
                   ((0, n_pad - n), (0, cfg["flat_p"] - bf_flat.shape[1])))

    out = pl.pallas_call(
        functools.partial(graph_predictor_kernel, cfg=cfg),
        out_shape=jax.ShapeDtypeStruct((n_pad, cfg["out_p"]), jnp.float32),
        in_specs=[pl.BlockSpec(memory_space=pltpu.MemorySpace.VMEM)] * 4,
        out_specs=pl.BlockSpec(memory_space=pltpu.MemorySpace.VMEM),
    )(gf_p, bf_p, w_packed, b_packed)

    scores = out[:n, :nc]
    bbox_deltas = out[:n, nc:5 * nc]
    return scores, bbox_deltas


# ----------------------------------------------------------------------------
# Pure-JAX reference with the same numerics (bf16 MXU inputs, f32 accumulation)
# ----------------------------------------------------------------------------
def graph_predictor_ref(global_features, box_features, params):
    bf16, f32 = jnp.bfloat16, jnp.float32

    def mm(a, w):
        return jnp.dot(a.astype(bf16), w.astype(bf16), preferred_element_type=f32)

    n = box_features.shape[0]
    x = box_features.reshape(n, -1)

    h = jnp.maximum(mm(x, params["w6"]) + params["b6"], 0.0)
    feat = jnp.maximum(mm(h, params["w7"]) + params["b7"], 0.0)
    bbox = mm(feat, params["wb"]) + params["bb"]

    u = jnp.maximum(mm(x, params["wg"]) + params["bg"], 0.0)
    g = jnp.maximum(mm(global_features, params["wgl"]) + params["bgl"], 0.0)
    d = u.shape[-1]
    logits = mm(u, u.T) / math.sqrt(d)
    logits = logits - jnp.max(logits, axis=-1, keepdims=True)
    p = jnp.exp(logits)
    adj = p / jnp.sum(p, axis=-1, keepdims=True)
    msg = mm(adj, mm(u, params["wmp"]))
    v = jnp.maximum(msg + u, 0.0)
    scores = mm(v + g, params["wcls"]) + params["bcls"]
    return scores, bbox


def init_params(key, flat_in, rep, num_classes, d, cg):
    """Deterministic synthetic weights (shapes implied by the module __init__)."""
    ks = jax.random.split(key, 13)

    def lin(k, fi, fo):
        return jax.random.normal(k, (fi, fo), jnp.float32) / math.sqrt(fi)

    def bias(k, fo):
        return 0.1 * jax.random.normal(k, (fo,), jnp.float32)

    return {
        # box_head (TwoMLPHead): fc6 [flat_in, rep], fc7 [rep, rep]
        "w6": lin(ks[0], flat_in, rep), "b6": bias(ks[7], rep),
        "w7": lin(ks[1], rep, rep),     "b7": bias(ks[8], rep),
        # bbox_pred: Linear(in_channels=rep, num_classes*4)
        "wb": lin(ks[2], rep, num_classes * 4), "bb": bias(ks[9], num_classes * 4),
        # MEFARG graph head (stand-in)
        "wg": lin(ks[3], flat_in, d),   "bg": bias(ks[10], d),
        "wgl": lin(ks[4], cg, d),       "bgl": bias(ks[11], d),
        "wmp": lin(ks[5], d, d),
        "wcls": lin(ks[6], d, num_classes), "bcls": bias(ks[12], num_classes),
    }


if __name__ == "__main__":
    key = jax.random.PRNGKey(0)

    N = 8            # number of boxes == num_node (one graph node per box)
    C, POOL = 4, 4   # ROI-pooled box feature map: [N, C, POOL, POOL] (NCHW)
    FLAT = C * POOL * POOL
    REP = 32         # in_channels of bbox_pred (box_head output width)
    NUM_CLASSES = 8  # including background
    D = 32           # graph hidden dim
    CG = 16          # global feature channels

    k_gf, k_bf, k_p = jax.random.split(key, 3)
    global_features = jax.random.normal(k_gf, (N, CG), jnp.float32)
    box_features = jax.random.normal(k_bf, (N, C, POOL, POOL), jnp.float32)
    params = init_params(k_p, FLAT, REP, NUM_CLASSES, D, CG)

    scores, bbox_deltas = graph_predictor(global_features, box_features, params)
    jax.block_until_ready((scores, bbox_deltas))

    scores_r, bbox_r = graph_predictor_ref(global_features, box_features, params)

    assert scores.shape == (N, NUM_CLASSES)
    assert bbox_deltas.shape == (N, NUM_CLASSES * 4)
    assert scores.dtype == jnp.float32 and bbox_deltas.dtype == jnp.float32
    assert jnp.allclose(scores, scores_r, rtol=3e-2, atol=3e-2)
    assert jnp.allclose(bbox_deltas, bbox_r, rtol=3e-2, atol=3e-2)

    print("KERNEL_OK")
</pallas_src>

<mosaic_0001>
module attributes {stable_mosaic.version = 11 : i64} {
  func.func @graph_predictor_kernel(%arg0: memref<8x128xf32, #tpu.memory_space<vmem>>, %arg1: memref<8x128xf32, #tpu.memory_space<vmem>>, %arg2: memref<896x128xbf16, #tpu.memory_space<vmem>>, %arg3: memref<8x128xf32, #tpu.memory_space<vmem>>, %arg4: memref<8x128xf32, #tpu.memory_space<vmem>>) attributes {dimension_semantics = [], scalar_prefetch = 0 : i64, scratch_operands = 0 : i64, tpu.core_type = #tpu.core_type<tc>} {
    %c0 = arith.constant 0 : index
    %c0_0 = arith.constant 0 : index
    %0 = vector.load %arg1[%c0, %c0_0] : memref<8x128xf32, #tpu.memory_space<vmem>>, vector<8x128xf32>
    %1 = arith.truncf %0 : vector<8x128xf32> to vector<8x128xbf16>
    %c0_1 = arith.constant 0 : index
    %c0_2 = arith.constant 0 : index
    %2 = vector.load %arg0[%c0_1, %c0_2] : memref<8x128xf32, #tpu.memory_space<vmem>>, vector<8x128xf32>
    %3 = arith.truncf %2 : vector<8x128xf32> to vector<8x128xbf16>
    %c0_3 = arith.constant 0 : index
    %c0_4 = arith.constant 0 : index
    %4 = vector.load %arg3[%c0_3, %c0_4] : memref<8x128xf32, #tpu.memory_space<vmem>>, vector<8x128xf32>
    %c0_5 = arith.constant 0 : index
    %c0_6 = arith.constant 0 : index
    %5 = vector.load %arg2[%c0_5, %c0_6] : memref<896x128xbf16, #tpu.memory_space<vmem>>, vector<128x128xbf16>
    %cst = arith.constant dense<0.000000e+00> : vector<8x128xf32>
    %6 = tpu.matmul %1, %5, %cst {dimension_numbers = #tpu.dot_dimension_numbers<[1], [0], [0], [1], [0, 0, 1, 1], [], []>} : vector<8x128xbf16>, vector<128x128xbf16>, vector<8x128xf32> -> vector<8x128xf32>
    %7 = vector.extract_strided_slice %4 {offsets = [0, 0], sizes = [1, 128], strides = [1, 1]} : vector<8x128xf32> to vector<1x128xf32>
    %8 = vector.broadcast %7 : vector<1x128xf32> to vector<8x128xf32>
    %9 = arith.addf %6, %8 : vector<8x128xf32>
    %cst_7 = arith.constant 0.000000e+00 : f32
    %10 = vector.broadcast %cst_7 : f32 to vector<8x128xf32>
    %11 = arith.maximumf %9, %10 : vector<8x128xf32>
    %c128 = arith.constant 128 : index
    %c0_8 = arith.constant 0 : index
    %12 = vector.load %arg2[%c128, %c0_8] : memref<896x128xbf16, #tpu.memory_space<vmem>>, vector<128x128xbf16>
    %13 = arith.truncf %11 : vector<8x128xf32> to vector<8x128xbf16>
    %cst_9 = arith.constant dense<0.000000e+00> : vector<8x128xf32>
    %14 = tpu.matmul %13, %12, %cst_9 {dimension_numbers = #tpu.dot_dimension_numbers<[1], [0], [0], [1], [0, 0, 1, 1], [], []>} : vector<8x128xbf16>, vector<128x128xbf16>, vector<8x128xf32> -> vector<8x128xf32>
    %15 = vector.extract_strided_slice %4 {offsets = [1, 0], sizes = [1, 128], strides = [1, 1]} : vector<8x128xf32> to vector<1x128xf32>
    %16 = vector.broadcast %15 : vector<1x128xf32> to vector<8x128xf32>
    %17 = arith.addf %14, %16 : vector<8x128xf32>
    %cst_10 = arith.constant 0.000000e+00 : f32
    %18 = vector.broadcast %cst_10 : f32 to vector<8x128xf32>
    %19 = arith.maximumf %17, %18 : vector<8x128xf32>
    %c256 = arith.constant 256 : index
    %c0_11 = arith.constant 0 : index
    %20 = vector.load %arg2[%c256, %c0_11] : memref<896x128xbf16, #tpu.memory_space<vmem>>, vector<128x128xbf16>
    %cst_12 = arith.constant dense<0.000000e+00> : vector<8x128xf32>
    %21 = tpu.matmul %1, %20, %cst_12 {dimension_numbers = #tpu.dot_dimension_numbers<[1], [0], [0], [1], [0, 0, 1, 1], [], []>} : vector<8x128xbf16>, vector<128x128xbf16>, vector<8x128xf32> -> vector<8x128xf32>
    %22 = vector.extract_strided_slice %4 {offsets = [2, 0], sizes = [1, 128], strides = [1, 1]} : vector<8x128xf32> to vector<1x128xf32>
    %23 = vector.broadcast %22 : vector<1x128xf32> to vector<8x128xf32>
    %24 = arith.addf %21, %23 : vector<8x128xf32>
    %cst_13 = arith.constant 0.000000e+00 : f32
    %25 = vector.broadcast %cst_13 : f32 to vector<8x128xf32>
    %26 = arith.maximumf %24, %25 : vector<8x128xf32>
    %c384 = arith.constant 384 : index
    %c0_14 = arith.constant 0 : index
    %27 = vector.load %arg2[%c384, %c0_14] : memref<896x128xbf16, #tpu.memory_space<vmem>>, vector<128x128xbf16>
    %cst_15 = arith.constant dense<0.000000e+00> : vector<8x128xf32>
    %28 = tpu.matmul %3, %27, %cst_15 {dimension_numbers = #tpu.dot_dimension_numbers<[1], [0], [0], [1], [0, 0, 1, 1], [], []>} : vector<8x128xbf16>, vector<128x128xbf16>, vector<8x128xf32> -> vector<8x128xf32>
    %29 = vector.extract_strided_slice %4 {offsets = [3, 0], sizes = [1, 128], strides = [1, 1]} : vector<8x128xf32> to vector<1x128xf32>
    %30 = vector.broadcast %29 : vector<1x128xf32> to vector<8x128xf32>
    %31 = arith.addf %28, %30 : vector<8x128xf32>
    %cst_16 = arith.constant 0.000000e+00 : f32
    %32 = vector.broadcast %cst_16 : f32 to vector<8x128xf32>
    %33 = arith.maximumf %31, %32 : vector<8x128xf32>
    %34 = arith.truncf %26 : vector<8x128xf32> to vector<8x128xbf16>
    %cst_17 = arith.constant dense<0.000000e+00> : vector<8x8xf32>
    %35 = tpu.matmul %34, %34, %cst_17 {dimension_numbers = #tpu.dot_dimension_numbers<[1], [1], [0], [0], [0, 0, 1, 0], [], []>} : vector<8x128xbf16>, vector<8x128xbf16>, vector<8x8xf32> -> vector<8x8xf32>
    %cst_18 = arith.constant 0.176776692 : f32
    %36 = vector.broadcast %cst_18 : f32 to vector<8x8xf32>
    %37 = arith.mulf %35, %36 : vector<8x8xf32>
    %cst_19 = arith.constant dense<0xFF800000> : vector<8xf32>
    %38 = vector.multi_reduction <maximumf>, %37, %cst_19 [1] : vector<8x8xf32> to vector<8xf32>
    %39 = vector.shape_cast %38 : vector<8xf32> to vector<8x1xf32>
    %40 = vector.broadcast %39 : vector<8x1xf32> to vector<8x8xf32>
    %41 = arith.subf %37, %40 : vector<8x8xf32>
    %42 = math.exp %41 : vector<8x8xf32>
    %cst_20 = arith.constant dense<0.000000e+00> : vector<8xf32>
    %43 = vector.multi_reduction <add>, %42, %cst_20 [1] : vector<8x8xf32> to vector<8xf32>
    %44 = vector.shape_cast %43 : vector<8xf32> to vector<8x1xf32>
    %45 = tpu.reciprocal %44 {approx = true} : vector<8x1xf32> -> vector<8x1xf32>
    %46 = vector.broadcast %45 : vector<8x1xf32> to vector<8x8xf32>
    %47 = arith.mulf %42, %46 : vector<8x8xf32>
    %c512 = arith.constant 512 : index
    %c0_21 = arith.constant 0 : index
    %48 = vector.load %arg2[%c512, %c0_21] : memref<896x128xbf16, #tpu.memory_space<vmem>>, vector<128x128xbf16>
    %cst_22 = arith.constant dense<0.000000e+00> : vector<8x128xf32>
    %49 = tpu.matmul %34, %48, %cst_22 {dimension_numbers = #tpu.dot_dimension_numbers<[1], [0], [0], [1], [0, 0, 1, 1], [], []>} : vector<8x128xbf16>, vector<128x128xbf16>, vector<8x128xf32> -> vector<8x128xf32>
    %50 = arith.truncf %47 : vector<8x8xf32> to vector<8x8xbf16>
    %51 = arith.truncf %49 : vector<8x128xf32> to vector<8x128xbf16>
    %cst_23 = arith.constant dense<0.000000e+00> : vector<8x128xf32>
    %52 = tpu.matmul %50, %51, %cst_23 {dimension_numbers = #tpu.dot_dimension_numbers<[1], [0], [0], [1], [0, 0, 1, 1], [], []>} : vector<8x8xbf16>, vector<8x128xbf16>, vector<8x128xf32> -> vector<8x128xf32>
    %53 = arith.addf %52, %26 : vector<8x128xf32>
    %cst_24 = arith.constant 0.000000e+00 : f32
    %54 = vector.broadcast %cst_24 : f32 to vector<8x128xf32>
    %55 = arith.maximumf %53, %54 : vector<8x128xf32>
    %c640 = arith.constant 640 : index
    %c0_25 = arith.constant 0 : index
    %56 = vector.load %arg2[%c640, %c0_25] : memref<896x128xbf16, #tpu.memory_space<vmem>>, vector<128x128xbf16>
    %c768 = arith.constant 768 : index
    %c0_26 = arith.constant 0 : index
    %57 = vector.load %arg2[%c768, %c0_26] : memref<896x128xbf16, #tpu.memory_space<vmem>>, vector<128x128xbf16>
    %58 = arith.addf %55, %33 : vector<8x128xf32>
    %59 = arith.truncf %58 : vector<8x128xf32> to vector<8x128xbf16>
    %cst_27 = arith.constant dense<0.000000e+00> : vector<8x128xf32>
    %60 = tpu.matmul %59, %56, %cst_27 {dimension_numbers = #tpu.dot_dimension_numbers<[1], [0], [0], [1], [0, 0, 1, 1], [], []>} : vector<8x128xbf16>, vector<128x128xbf16>, vector<8x128xf32> -> vector<8x128xf32>
    %61 = arith.truncf %19 : vector<8x128xf32> to vector<8x128xbf16>
    %cst_28 = arith.constant dense<0.000000e+00> : vector<8x128xf32>
    %62 = tpu.matmul %61, %57, %cst_28 {dimension_numbers = #tpu.dot_dimension_numbers<[1], [0], [0], [1], [0, 0, 1, 1], [], []>} : vector<8x128xbf16>, vector<128x128xbf16>, vector<8x128xf32> -> vector<8x128xf32>
    %63 = arith.addf %60, %62 : vector<8x128xf32>
    %64 = vector.extract_strided_slice %4 {offsets = [4, 0], sizes = [1, 128], strides = [1, 1]} : vector<8x128xf32> to vector<1x128xf32>
    %65 = vector.broadcast %64 : vector<1x128xf32> to vector<8x128xf32>
    %66 = arith.addf %63, %65 : vector<8x128xf32>
    %c0_29 = arith.constant 0 : index
    %c0_30 = arith.constant 0 : index
    %67 = vector.load %arg4[%c0_29, %c0_30] : memref<8x128xf32, #tpu.memory_space<vmem>>, vector<8x128xf32>
    tpu.vector_store %arg4[%c0_29, %c0_30], %66 {strides = array<i32>} : memref<8x128xf32, #tpu.memory_space<vmem>>, vector<8x128xf32>,
    return
  }
}

</mosaic_0001>

<llo_original>
// kernel: tpu_custom_call.1
$region0: #{tpu_custom_call.1}
  #allocation0 [shape = 'u32[]', space=smem, size = 0x4, offset = 0x4, fixed_abs, tag = 'smem constant byte address 0x4 - core index']
  #allocation1 [shape = 'u32[144,128]{1,0:T(1,128)}', space=vmem, size = 0x12000, scoped, tag = 'internal scratch']
  %s0 = inlined_call_operand.hbm [shape: f32[8,128], index: 0, kind: input, shape index: {}]
  %s1 = inlined_call_operand.hbm [shape: f32[8,128], index: 1, kind: input, shape index: {}]
  %s2 = inlined_call_operand.hbm [shape: bf16[896,128], index: 2, kind: input, shape index: {}]
  %s3 = inlined_call_operand.hbm [shape: f32[8,128], index: 3, kind: input, shape index: {}]
  %s4 = inlined_call_operand.hbm [shape: f32[8,128], index: 4, kind: output, shape index: {}]
  %s5 = sld [smem:[#allocation0]]
  $region42: #{tpu_custom_call.1} parent=0
    _
  %s7 = ssub.s32 1, %s5
  %s8 = scalar_select 0, %s7, %s5
  $region1: #{tpu_custom_call.1} parent=0
    #allocation2 [shape = 'u8[4096]{0}', space=vmem, size = 0x1000, scoped, tag = 'input window, operand 0, single buffered']
    #allocation3 [shape = 's32[1]{0}', space=sflag, size = 0x4, scoped, tag = 'scoped memory for tpu_custom_call.1']
    #allocation4 [shape = 's32[1]{0}', space=sflag, size = 0x4, scoped, tag = 'scoped memory for tpu_custom_call.1']
    #allocation5 [shape = 'u8[4096]{0}', space=vmem, size = 0x1000, scoped, tag = 'input window, operand 1, single buffered']
    #allocation6 [shape = 's32[1]{0}', space=sflag, size = 0x4, scoped, tag = 'scoped memory for tpu_custom_call.1']
    #allocation7 [shape = 'u8[229376]{0}', space=vmem, size = 0x38000, scoped, tag = 'input window, operand 2, single buffered']
    #allocation8 [shape = 'u8[4096]{0}', space=vmem, size = 0x1000, scoped, tag = 'input window, operand 3, single buffered']
    #allocation9 [shape = 's32[1]{0}', space=sflag, size = 0x4, scoped, tag = 'scoped memory for tpu_custom_call.1']
    #allocation10 [shape = 'u8[4096]{0}', space=vmem, size = 0x1000, scoped, tag = 'output window, operand 0, single buffered']
    %9 = vsyncpa [#allocation3], 0
    %10 = vsyncpa [#allocation6], 0
    %11 = vsyncpa [#allocation9], 0
    %12 = vsyncpa [#allocation4], 0
    // Predicated region
    $region2: #{tpu_custom_call.1} parent=1 // pred_check
      _
    $region3: #{tpu_custom_call.1} parent=1 // pred_check_branch
      %14 = sbr.rel (0) target = $region5
    $region4: #{tpu_custom_call.1} parent=1 // pred_region
      %s16 = ssub.s32 128, 128
      %17 = vsyncadd [#allocation3], %s16
      %s19 = sshll.u32 [#allocation2], 4
      %s20 = int_to_ptr.vmem [resolvable:$true] %s19
      %22 = dma.hbm_to_vmem [thread:$0]  %s0, 128, %s20, [#allocation3]
    $region5: #{tpu_custom_call.1} parent=1 // pred_fallthru
      _
    // Predicated region
    $region6: #{tpu_custom_call.1} parent=1 // pred_check
      _
    $region7: #{tpu_custom_call.1} parent=1 // pred_check_branch
      %24 = sbr.rel (0) target = $region9
    $region8: #{tpu_custom_call.1} parent=1 // pred_region
      %s26 = ssub.s32 128, 128
      %27 = vsyncadd [#allocation6], %s26
      %s29 = sshll.u32 [#allocation5], 4
      %s30 = int_to_ptr.vmem [resolvable:$true] %s29
      %32 = dma.hbm_to_vmem [thread:$0]  %s1, 128, %s30, [#allocation6]
    $region9: #{tpu_custom_call.1} parent=1 // pred_fallthru
      _
    // Predicated region
    $region10: #{tpu_custom_call.1} parent=1 // pred_check
      _
    $region11: #{tpu_custom_call.1} parent=1 // pred_check_branch
      %34 = sbr.rel (0) target = $region13
    $region12: #{tpu_custom_call.1} parent=1 // pred_region
      %s36 = ssub.s32 7168, 7168
      %37 = vsyncadd [#allocation6], %s36
      %s38 = sshll.u32 [#allocation7], 4
      %s39 = int_to_ptr.vmem [resolvable:$true] %s38
      %44 = dma.hbm_to_vmem [thread:$0]  %s2, 7168, %s39, [#allocation6], 64, 64, 4
    $region13: #{tpu_custom_call.1} parent=1 // pred_fallthru
      _
    // Predicated region
    $region14: #{tpu_custom_call.1} parent=1 // pred_check
      _
    $region15: #{tpu_custom_call.1} parent=1 // pred_check_branch
      %46 = sbr.rel (0) target = $region17
    $region16: #{tpu_custom_call.1} parent=1 // pred_region
      %s48 = ssub.s32 128, 128
      %49 = vsyncadd [#allocation9], %s48
      %s51 = sshll.u32 [#allocation8], 4
      %s52 = int_to_ptr.vmem [resolvable:$true] %s51
      %54 = dma.hbm_to_vmem [thread:$0]  %s3, 128, %s52, [#allocation9]
    $region17: #{tpu_custom_call.1} parent=1 // pred_fallthru
      _
    // Predicated region
    $region18: #{tpu_custom_call.1} parent=1 // pred_check
      _
    $region19: #{tpu_custom_call.1} parent=1 // pred_check_branch
      %56 = sbr.rel (0) target = $region21
    $region20: #{tpu_custom_call.1} parent=1 // pred_region
      %57 = dma.done [#allocation3], 128
    $region21: #{tpu_custom_call.1} parent=1 // pred_fallthru
      _
    // Predicated region
    $region22: #{tpu_custom_call.1} parent=1 // pred_check
      _
    $region23: #{tpu_custom_call.1} parent=1 // pred_check_branch
      %59 = sbr.rel (0) target = $region25
    $region24: #{tpu_custom_call.1} parent=1 // pred_region
      %60 = dma.done [#allocation6], 128
    $region25: #{tpu_custom_call.1} parent=1 // pred_fallthru
      _
    // Predicated region
    $region26: #{tpu_custom_call.1} parent=1 // pred_check
      _
    $region27: #{tpu_custom_call.1} parent=1 // pred_check_branch
      %62 = sbr.rel (0) target = $region29
    $region28: #{tpu_custom_call.1} parent=1 // pred_region
      %63 = dma.done [#allocation6], 7168
    $region29: #{tpu_custom_call.1} parent=1 // pred_fallthru
      _
    // Predicated region
    $region30: #{tpu_custom_call.1} parent=1 // pred_check
      _
    $region31: #{tpu_custom_call.1} parent=1 // pred_check_branch
      %65 = sbr.rel (0) target = $region33
    $region32: #{tpu_custom_call.1} parent=1 // pred_region
      %66 = dma.done [#allocation9], 128
    $region33: #{tpu_custom_call.1} parent=1 // pred_fallthru
      _
    %v68 = vld [vmem:[#allocation5] sm:$0xff]
    %v69 = vpack.c.bf16 %v68, %v68
    %v70 = vld [vmem:[#allocation2] sm:$0xff]
    %v71 = vpack.c.bf16 %v70, %v70
    %v72 = vld [vmem:[#allocation8] sm:$0xff]
    %v73 = vld [vmem:[#allocation7] sm:$0xf]
    %v74 = vld [vmem:[#allocation7 + $0x4] sm:$0xf]
    %v75 = vld [vmem:[#allocation7 + $0x8] sm:$0xf]
    %v76 = vld [vmem:[#allocation7 + $0xc] sm:$0xf]
    %v77 = vld [vmem:[#allocation7 + $0x10] sm:$0xf]
    %v78 = vld [vmem:[#allocation7 + $0x14] sm:$0xf]
    %v79 = vld [vmem:[#allocation7 + $0x18] sm:$0xf]
    %v80 = vld [vmem:[#allocation7 + $0x1c] sm:$0xf]
    %v81 = vld [vmem:[#allocation7 + $0x20] sm:$0xf]
    %v82 = vld [vmem:[#allocation7 + $0x24] sm:$0xf]
    %v83 = vld [vmem:[#allocation7 + $0x28] sm:$0xf]
    %v84 = vld [vmem:[#allocation7 + $0x2c] sm:$0xf]
    %v85 = vld [vmem:[#allocation7 + $0x30] sm:$0xf]
    %v86 = vld [vmem:[#allocation7 + $0x34] sm:$0xf]
    %v87 = vld [vmem:[#allocation7 + $0x38] sm:$0xf]
    %v88 = vld [vmem:[#allocation7 + $0x3c] sm:$0xf]
    %v89 = vlaneseq
    %v90 = vshrl.u32 %v89, 7
    %v91 = vsub.s32 0, %v90
    %v92 = vrot.slane %v72, %v91
    %v109 = vunpack.c.l.b16 %v73
    %v110 = vunpack.c.l.b16 %v74
    %v111 = vunpack.c.l.b16 %v75
    %v112 = vunpack.c.l.b16 %v76
    %v113 = vunpack.c.l.b16 %v77
    %v114 = vunpack.c.l.b16 %v78
    %v115 = vunpack.c.l.b16 %v79
    %v116 = vunpack.c.l.b16 %v80
    %v117 = vunpack.c.l.b16 %v81
    %v118 = vunpack.c.l.b16 %v82
    %v119 = vunpack.c.l.b16 %v83
    %v120 = vunpack.c.l.b16 %v84
    %v121 = vunpack.c.l.b16 %v85
    %v122 = vunpack.c.l.b16 %v86
    %v123 = vunpack.c.l.b16 %v87
    %v124 = vunpack.c.l.b16 %v88
    %v125 = vpack.c.b16 %v110, %v109
    %v126 = vpack.c.b16 %v112, %v111
    %v127 = vpack.c.b16 %v114, %v113
    %v128 = vpack.c.b16 %v116, %v115
    %v129 = vpack.c.b16 %v118, %v117
    %v130 = vpack.c.b16 %v120, %v119
    %v131 = vpack.c.b16 %v122, %v121
    %v132 = vpack.c.b16 %v124, %v123
    %141 = vmatprep.subr.bf16.mxu0 0
    %142 = vmatpush1.bf16.msra.mxu0 %v132
    %143 = vmatprep.subr.bf16.mxu0 0
    %144 = vmatpush1.bf16.msra.mxu0 %v131
    %145 = vmatprep.subr.bf16.mxu0 0
    %146 = vmatpush1.bf16.msra.mxu0 %v130
    %147 = vmatprep.subr.bf16.mxu0 0
    %148 = vmatpush1.bf16.msra.mxu0 %v129
    %149 = vmatprep.subr.bf16.mxu0 0
    %150 = vmatpush1.bf16.msra.mxu0 %v128
    %151 = vmatprep.subr.bf16.mxu0 0
    %152 = vmatpush1.bf16.msra.mxu0 %v127
    %153 = vmatprep.subr.bf16.mxu0 0
    %154 = vmatpush1.bf16.msra.mxu0 %v126
    %155 = vmatprep.subr.bf16.mxu0 0
    %156 = vmatpush1.bf16.msra.mxu0 %v125
    %157 = vmatprep.subr.bf16.mxu0 0
    %158 = vmatpush2.bf16.msra.mxu0 0
    %159 = vmatprep.subr.bf16.mxu0 0
    %160 = vmatpush2.bf16.msra.mxu0 0
    %161 = vmatprep.subr.bf16.mxu0 0
    %162 = vmatpush2.bf16.msra.mxu0 0
    %163 = vmatprep.subr.bf16.mxu0 0
    %164 = vmatpush2.bf16.msra.mxu0 0
    %165 = vmatprep.subr.bf16.mxu0 0
    %166 = vmatpush2.bf16.msra.mxu0 0
    %167 = vmatprep.subr.bf16.mxu0 0
    %168 = vmatpush2.bf16.msra.mxu0 0
    %169 = vmatprep.subr.bf16.mxu0 0
    %170 = vmatpush2.bf16.msra.mxu0 0
    %171 = vmatprep.subr.bf16.mxu0 0
    %172 = vmatpush2.bf16.msra.mxu0 0
    %173 = vmatprep.mubr.bf16.mxu0 0
    %174 = vmatmul.mubr.bf16.gmra.mxu0 %v69
    %v175 = vpop.f32.mrf.mxu0
    %v176 = vadd.f32 %v92, %v175
    %v177 = vpop.f32.mrf.mxu0
    %v178 = vpop.f32.mrf.mxu0
    %v179 = vpop.f32.mrf.mxu0
    %180 = vdwg.mxu0
    %v181 = vmax.f32 %v176, 0.0
    %v182 = vld [vmem:[#allocation7 + $0x40] sm:$0xf]
    %v183 = vld [vmem:[#allocation7 + $0x44] sm:$0xf]
    %v184 = vld [vmem:[#allocation7 + $0x48] sm:$0xf]
    %v185 = vld [vmem:[#allocation7 + $0x4c] sm:$0xf]
    %v186 = vld [vmem:[#allocation7 + $0x50] sm:$0xf]
    %v187 = vld [vmem:[#allocation7 + $0x54] sm:$0xf]
    %v188 = vld [vmem:[#allocation7 + $0x58] sm:$0xf]
    %v189 = vld [vmem:[#allocation7 + $0x5c] sm:$0xf]
    %v190 = vld [vmem:[#allocation7 + $0x60] sm:$0xf]
    %v191 = vld [vmem:[#allocation7 + $0x64] sm:$0xf]
    %v192 = vld [vmem:[#allocation7 + $0x68] sm:$0xf]
    %v193 = vld [vmem:[#allocation7 + $0x6c] sm:$0xf]
    %v194 = vld [vmem:[#allocation7 + $0x70] sm:$0xf]
    %v195 = vld [vmem:[#allocation7 + $0x74] sm:$0xf]
    %v196 = vld [vmem:[#allocation7 + $0x78] sm:$0xf]
    %v197 = vld [vmem:[#allocation7 + $0x7c] sm:$0xf]
    %v198 = vpack.c.bf16 %v181, %v181
    %v199 = vlaneseq
    %v200 = vshrl.u32 %v199, 7
    %v201 = vsub.s32 1, %v200
    %v202 = vrot.slane %v72, %v201
    %v219 = vunpack.c.l.b16 %v182
    %v220 = vunpack.c.l.b16 %v183
    %v221 = vunpack.c.l.b16 %v184
    %v222 = vunpack.c.l.b16 %v185
    %v223 = vunpack.c.l.b16 %v186
    %v224 = vunpack.c.l.b16 %v187
    %v225 = vunpack.c.l.b16 %v188
    %v226 = vunpack.c.l.b16 %v189
    %v227 = vunpack.c.l.b16 %v190
    %v228 = vunpack.c.l.b16 %v191
    %v229 = vunpack.c.l.b16 %v192
    %v230 = vunpack.c.l.b16 %v193
    %v231 = vunpack.c.l.b16 %v194
    %v232 = vunpack.c.l.b16 %v195
    %v233 = vunpack.c.l.b16 %v196
    %v234 = vunpack.c.l.b16 %v197
    %v235 = vpack.c.b16 %v220, %v219
    %v236 = vpack.c.b16 %v222, %v221
    %v237 = vpack.c.b16 %v224, %v223
    %v238 = vpack.c.b16 %v226, %v225
    %v239 = vpack.c.b16 %v228, %v227
    %v240 = vpack.c.b16 %v230, %v229
    %v241 = vpack.c.b16 %v232, %v231
    %v242 = vpack.c.b16 %v234, %v233
    %251 = vmatprep.subr.bf16.mxu0 0
    %252 = vmatpush1.bf16.msra.mxu0 %v242
    %253 = vmatprep.subr.bf16.mxu0 0
    %254 = vmatpush1.bf16.msra.mxu0 %v241
    %255 = vmatprep.subr.bf16.mxu0 0
    %256 = vmatpush1.bf16.msra.mxu0 %v240
    %257 = vmatprep.subr.bf16.mxu0 0
    %258 = vmatpush1.bf16.msra.mxu0 %v239
    %259 = vmatprep.subr.bf16.mxu0 0
    %260 = vmatpush1.bf16.msra.mxu0 %v238
    %261 = vmatprep.subr.bf16.mxu0 0
    %262 = vmatpush1.bf16.msra.mxu0 %v237
    %263 = vmatprep.subr.bf16.mxu0 0
    %264 = vmatpush1.bf16.msra.mxu0 %v236
    %265 = vmatprep.subr.bf16.mxu0 0
    %266 = vmatpush1.bf16.msra.mxu0 %v235
    %267 = vmatprep.subr.bf16.mxu0 0
    %268 = vmatpush2.bf16.msra.mxu0 0
    %269 = vmatprep.subr.bf16.mxu0 0
    %270 = vmatpush2.bf16.msra.mxu0 0
    %271 = vmatprep.subr.bf16.mxu0 0
    %272 = vmatpush2.bf16.msra.mxu0 0
    %273 = vmatprep.subr.bf16.mxu0 0
    %274 = vmatpush2.bf16.msra.mxu0 0
    %275 = vmatprep.subr.bf16.mxu0 0
    %276 = vmatpush2.bf16.msra.mxu0 0
    %277 = vmatprep.subr.bf16.mxu0 0
    %278 = vmatpush2.bf16.msra.mxu0 0
    %279 = vmatprep.subr.bf16.mxu0 0
    %280 = vmatpush2.bf16.msra.mxu0 0
    %281 = vmatprep.subr.bf16.mxu0 0
    %282 = vmatpush2.bf16.msra.mxu0 0
    %283 = vmatprep.mubr.bf16.mxu0 0
    %284 = vmatmul.mubr.bf16.gmra.mxu0 %v198
    %v285 = vpop.f32.mrf.mxu0
    %v286 = vadd.f32 %v202, %v285
    %v287 = vpop.f32.mrf.mxu0
    %v288 = vpop.f32.mrf.mxu0
    %v289 = vpop.f32.mrf.mxu0
    %290 = vdwg.mxu0
    %v291 = vmax.f32 %v286, 0.0
    %v292 = vld [vmem:[#allocation7 + $0x80] sm:$0xf]
    %v293 = vld [vmem:[#allocation7 + $0x84] sm:$0xf]
    %v294 = vld [vmem:[#allocation7 + $0x88] sm:$0xf]
    %v295 = vld [vmem:[#allocation7 + $0x8c] sm:$0xf]
    %v296 = vld [vmem:[#allocation7 + $0x90] sm:$0xf]
    %v297 = vld [vmem:[#allocation7 + $0x94] sm:$0xf]
    %v298 = vld [vmem:[#allocation7 + $0x98] sm:$0xf]
    %v299 = vld [vmem:[#allocation7 + $0x9c] sm:$0xf]
    %v300 = vld [vmem:[#allocation7 + $0xa0] sm:$0xf]
    %v301 = vld [vmem:[#allocation7 + $0xa4] sm:$0xf]
    %v302 = vld [vmem:[#allocation7 + $0xa8] sm:$0xf]
    %v303 = vld [vmem:[#allocation7 + $0xac] sm:$0xf]
    %v304 = vld [vmem:[#allocation7 + $0xb0] sm:$0xf]
    %v305 = vld [vmem:[#allocation7 + $0xb4] sm:$0xf]
    %v306 = vld [vmem:[#allocation7 + $0xb8] sm:$0xf]
    %v307 = vld [vmem:[#allocation7 + $0xbc] sm:$0xf]
    %v308 = vlaneseq
    %v309 = vshrl.u32 %v308, 7
    %v310 = vsub.s32 2, %v309
    %v311 = vrot.slane %v72, %v310
    %v328 = vunpack.c.l.b16 %v292
    %v329 = vunpack.c.l.b16 %v293
    %v330 = vunpack.c.l.b16 %v294
    %v331 = vunpack.c.l.b16 %v295
    %v332 = vunpack.c.l.b16 %v296
    %v333 = vunpack.c.l.b16 %v297
    %v334 = vunpack.c.l.b16 %v298
    %v335 = vunpack.c.l.b16 %v299
    %v336 = vunpack.c.l.b16 %v300
    %v337 = vunpack.c.l.b16 %v301
    %v338 = vunpack.c.l.b16 %v302
    %v339 = vunpack.c.l.b16 %v303
    %v340 = vunpack.c.l.b16 %v304
    %v341 = vunpack.c.l.b16 %v305
    %v342 = vunpack.c.l.b16 %v306
    %v343 = vunpack.c.l.b16 %v307
    %v344 = vpack.c.b16 %v329, %v328
    %v345 = vpack.c.b16 %v331, %v330
    %v346 = vpack.c.b16 %v333, %v332
    %v347 = vpack.c.b16 %v335, %v334
    %v348 = vpack.c.b16 %v337, %v336
    %v349 = vpack.c.b16 %v339, %v338
    %v350 = vpack.c.b16 %v341, %v340
    %v351 = vpack.c.b16 %v343, %v342
    %360 = vmatprep.subr.bf16.mxu0 0
    %361 = vmatpush1.bf16.msra.mxu0 %v351
    %362 = vmatprep.subr.bf16.mxu0 0
    %363 = vmatpush1.bf16.msra.mxu0 %v350
    %364 = vmatprep.subr.bf16.mxu0 0
    %365 = vmatpush1.bf16.msra.mxu0 %v349
    %366 = vmatprep.subr.bf16.mxu0 0
    %367 = vmatpush1.bf16.msra.mxu0 %v348
    %368 = vmatprep.subr.bf16.mxu0 0
    %369 = vmatpush1.bf16.msra.mxu0 %v347
    %370 = vmatprep.subr.bf16.mxu0 0
    %371 = vmatpush1.bf16.msra.mxu0 %v346
    %372 = vmatprep.subr.bf16.mxu0 0
    %373 = vmatpush1.bf16.msra.mxu0 %v345
    %374 = vmatprep.subr.bf16.mxu0 0
    %375 = vmatpush1.bf16.msra.mxu0 %v344
    %376 = vmatprep.subr.bf16.mxu0 0
    %377 = vmatpush2.bf16.msra.mxu0 0
    %378 = vmatprep.subr.bf16.mxu0 0
    %379 = vmatpush2.bf16.msra.mxu0 0
    %380 = vmatprep.subr.bf16.mxu0 0
    %381 = vmatpush2.bf16.msra.mxu0 0
    %382 = vmatprep.subr.bf16.mxu0 0
    %383 = vmatpush2.bf16.msra.mxu0 0
    %384 = vmatprep.subr.bf16.mxu0 0
    %385 = vmatpush2.bf16.msra.mxu0 0
    %386 = vmatprep.subr.bf16.mxu0 0
    %387 = vmatpush2.bf16.msra.mxu0 0
    %388 = vmatprep.subr.bf16.mxu0 0
    %389 = vmatpush2.bf16.msra.mxu0 0
    %390 = vmatprep.subr.bf16.mxu0 0
    %391 = vmatpush2.bf16.msra.mxu0 0
    %392 = vmatprep.mubr.bf16.mxu0 0
    %393 = vmatmul.mubr.bf16.gmra.mxu0 %v69
    %v394 = vpop.f32.mrf.mxu0
    %v395 = vadd.f32 %v311, %v394
    %v396 = vpop.f32.mrf.mxu0
    %v397 = vpop.f32.mrf.mxu0
    %v398 = vpop.f32.mrf.mxu0
    %399 = vdwg.mxu0
    %v400 = vmax.f32 %v395, 0.0
    %v401 = vld [vmem:[#allocation7 + $0xc0] sm:$0xf]
    %v402 = vld [vmem:[#allocation7 + $0xc4] sm:$0xf]
    %v403 = vld [vmem:[#allocation7 + $0xc8] sm:$0xf]
    %v404 = vld [vmem:[#allocation7 + $0xcc] sm:$0xf]
    %v405 = vld [vmem:[#allocation7 + $0xd0] sm:$0xf]
    %v406 = vld [vmem:[#allocation7 + $0xd4] sm:$0xf]
    %v407 = vld [vmem:[#allocation7 + $0xd8] sm:$0xf]
    %v408 = vld [vmem:[#allocation7 + $0xdc] sm:$0xf]
    %v409 = vld [vmem:[#allocation7 + $0xe0] sm:$0xf]
    %v410 = vld [vmem:[#allocation7 + $0xe4] sm:$0xf]
    %v411 = vld [vmem:[#allocation7 + $0xe8] sm:$0xf]
    %v412 = vld [vmem:[#allocation7 + $0xec] sm:$0xf]
    %v413 = vld [vmem:[#allocation7 + $0xf0] sm:$0xf]
    %v414 = vld [vmem:[#allocation7 + $0xf4] sm:$0xf]
    %v415 = vld [vmem:[#allocation7 + $0xf8] sm:$0xf]
    %v416 = vld [vmem:[#allocation7 + $0xfc] sm:$0xf]
    %v417 = vlaneseq
    %v418 = vshrl.u32 %v417, 7
    %v419 = vsub.s32 3, %v418
    %v420 = vrot.slane %v72, %v419
    %v437 = vunpack.c.l.b16 %v401
    %v438 = vunpack.c.l.b16 %v402
    %v439 = vunpack.c.l.b16 %v403
    %v440 = vunpack.c.l.b16 %v404
    %v441 = vunpack.c.l.b16 %v405
    %v442 = vunpack.c.l.b16 %v406
    %v443 = vunpack.c.l.b16 %v407
    %v444 = vunpack.c.l.b16 %v408
    %v445 = vunpack.c.l.b16 %v409
    %v446 = vunpack.c.l.b16 %v410
    %v447 = vunpack.c.l.b16 %v411
    %v448 = vunpack.c.l.b16 %v412
    %v449 = vunpack.c.l.b16 %v413
    %v450 = vunpack.c.l.b16 %v414
    %v451 = vunpack.c.l.b16 %v415
    %v452 = vunpack.c.l.b16 %v416
    %v453 = vpack.c.b16 %v438, %v437
    %v454 = vpack.c.b16 %v440, %v439
    %v455 = vpack.c.b16 %v442, %v441
    %v456 = vpack.c.b16 %v444, %v443
    %v457 = vpack.c.b16 %v446, %v445
    %v458 = vpack.c.b16 %v448, %v447
    %v459 = vpack.c.b16 %v450, %v449
    %v460 = vpack.c.b16 %v452, %v451
    %469 = vmatprep.subr.bf16.mxu0 0
    %470 = vmatpush1.bf16.msra.mxu0 %v460
    %471 = vmatprep.subr.bf16.mxu0 0
    %472 = vmatpush1.bf16.msra.mxu0 %v459
    %473 = vmatprep.subr.bf16.mxu0 0
    %474 = vmatpush1.bf16.msra.mxu0 %v458
    %475 = vmatprep.subr.bf16.mxu0 0
    %476 = vmatpush1.bf16.msra.mxu0 %v457
    %477 = vmatprep.subr.bf16.mxu0 0
    %478 = vmatpush1.bf16.msra.mxu0 %v456
    %479 = vmatprep.subr.bf16.mxu0 0
    %480 = vmatpush1.bf16.msra.mxu0 %v455
    %481 = vmatprep.subr.bf16.mxu0 0
    %482 = vmatpush1.bf16.msra.mxu0 %v454
    %483 = vmatprep.subr.bf16.mxu0 0
    %484 = vmatpush1.bf16.msra.mxu0 %v453
    %485 = vmatprep.subr.bf16.mxu0 0
    %486 = vmatpush2.bf16.msra.mxu0 0
    %487 = vmatprep.subr.bf16.mxu0 0
    %488 = vmatpush2.bf16.msra.mxu0 0
    %489 = vmatprep.subr.bf16.mxu0 0
    %490 = vmatpush2.bf16.msra.mxu0 0
    %491 = vmatprep.subr.bf16.mxu0 0
    %492 = vmatpush2.bf16.msra.mxu0 0
    %493 = vmatprep.subr.bf16.mxu0 0
    %494 = vmatpush2.bf16.msra.mxu0 0
    %495 = vmatprep.subr.bf16.mxu0 0
    %496 = vmatpush2.bf16.msra.mxu0 0
    %497 = vmatprep.subr.bf16.mxu0 0
    %498 = vmatpush2.bf16.msra.mxu0 0
    %499 = vmatprep.subr.bf16.mxu0 0
    %500 = vmatpush2.bf16.msra.mxu0 0
    %501 = vmatprep.mubr.bf16.mxu0 0
    %502 = vmatmul.mubr.bf16.gmra.mxu0 %v71
    %v503 = vpop.f32.mrf.mxu0
    %v504 = vadd.f32 %v420, %v503
    %v505 = vpop.f32.mrf.mxu0
    %v506 = vpop.f32.mrf.mxu0
    %v507 = vpop.f32.mrf.mxu0
    %508 = vdwg.mxu0
    %v509 = vmax.f32 %v504, 0.0
    %v510 = vpack.c.bf16 %v400, %v400
    %511 = vmatprep.subr.bf16.mxu0 0
    %512 = vmatpush1.bf16.xpose.msra.mxu0 0
    %513 = vmatprep.subr.bf16.mxu0 0
    %514 = vmatpush1.bf16.xpose.msra.mxu0 0
    %515 = vmatprep.subr.bf16.mxu0 0
    %516 = vmatpush1.bf16.xpose.msra.mxu0 0
    %517 = vmatprep.subr.bf16.mxu0 0
    %518 = vmatpush1.bf16.xpose.msra.mxu0 0
    %519 = vmatprep.subr.bf16.mxu0 0
    %520 = vmatpush1.bf16.xpose.msra.mxu0 0
    %521 = vmatprep.subr.bf16.mxu0 0
    %522 = vmatpush1.bf16.xpose.msra.mxu0 0
    %523 = vmatprep.subr.bf16.mxu0 0
    %524 = vmatpush1.bf16.xpose.msra.mxu0 0
    %525 = vmatprep.subr.bf16.mxu0 0
    %526 = vmatpush1.bf16.xpose.msra.mxu0 %v510
    %527 = vmatprep.subr.bf16.mxu0 0
    %528 = vmatpush2.bf16.xpose.msra.mxu0 0
    %529 = vmatprep.subr.bf16.mxu0 0
    %530 = vmatpush2.bf16.xpose.msra.mxu0 0
    %531 = vmatprep.subr.bf16.mxu0 0
    %532 = vmatpush2.bf16.xpose.msra.mxu0 0
    %533 = vmatprep.subr.bf16.mxu0 0
    %534 = vmatpush2.bf16.xpose.msra.mxu0 0
    %535 = vmatprep.subr.bf16.mxu0 0
    %536 = vmatpush2.bf16.xpose.msra.mxu0 0
    %537 = vmatprep.subr.bf16.mxu0 0
    %538 = vmatpush2.bf16.xpose.msra.mxu0 0
    %539 = vmatprep.subr.bf16.mxu0 0
    %540 = vmatpush2.bf16.xpose.msra.mxu0 0
    %541 = vmatprep.subr.bf16.mxu0 0
    %542 = vmatpush2.bf16.xpose.msra.mxu0 0
    %543 = vmatprep.mubr.bf16.mxu0 0
    %544 = vmatmul.mubr.bf16.gmra.mxu0 %v510
    %v545 = vpop.f32.mrf.mxu0
    %v546 = vadd.f32 0.0, %v545
    %v547 = vpop.f32.mrf.mxu0
    %v548 = vpop.f32.mrf.mxu0
    %v549 = vpop.f32.mrf.mxu0
    %550 = vdwg.mxu0
    %v551 = vmul.f32 %v546, 0.17677669
    %vm552 = vcmask 64512
    %v553 = vsel %vm552, %v551, -inf
    %554 = vmax.xlane.f32.xlu0 %v553
    %v555 = vpop.xlane.xlu0 %554
    %v556 = vsub.f32 %v551, %v555
    %v557 = vmul.f32 %v556, 1.442695
    %v558 = vpow.pop %v557
    %v559 = vsel %vm552, %v558, 0.0
    %560 = vadd.xlane.f32.xlu0 %v559
    %v561 = vpop.xlane.xlu0 %560
    %v562 = vrcp.pop %v561
    %v563 = vmul.f32 %v558, %v562
    %v564 = vld [vmem:[#allocation7 + $0x100] sm:$0xf]
    %v565 = vld [vmem:[#allocation7 + $0x104] sm:$0xf]
    %v566 = vld [vmem:[#allocation7 + $0x108] sm:$0xf]
    %v567 = vld [vmem:[#allocation7 + $0x10c] sm:$0xf]
    %v568 = vld [vmem:[#allocation7 + $0x110] sm:$0xf]
    %v569 = vld [vmem:[#allocation7 + $0x114] sm:$0xf]
    %v570 = vld [vmem:[#allocation7 + $0x118] sm:$0xf]
    %v571 = vld [vmem:[#allocation7 + $0x11c] sm:$0xf]
    %v572 = vld [vmem:[#allocation7 + $0x120] sm:$0xf]
    %v573 = vld [vmem:[#allocation7 + $0x124] sm:$0xf]
    %v574 = vld [vmem:[#allocation7 + $0x128] sm:$0xf]
    %v575 = vld [vmem:[#allocation7 + $0x12c] sm:$0xf]
    %v576 = vld [vmem:[#allocation7 + $0x130] sm:$0xf]
    %v577 = vld [vmem:[#allocation7 + $0x134] sm:$0xf]
    %v578 = vld [vmem:[#allocation7 + $0x138] sm:$0xf]
    %v579 = vld [vmem:[#allocation7 + $0x13c] sm:$0xf]
    %v596 = vunpack.c.l.b16 %v564
    %v597 = vunpack.c.l.b16 %v565
    %v598 = vunpack.c.l.b16 %v566
    %v599 = vunpack.c.l.b16 %v567
    %v600 = vunpack.c.l.b16 %v568
    %v601 = vunpack.c.l.b16 %v569
    %v602 = vunpack.c.l.b16 %v570
    %v603 = vunpack.c.l.b16 %v571
    %v604 = vunpack.c.l.b16 %v572
    %v605 = vunpack.c.l.b16 %v573
    %v606 = vunpack.c.l.b16 %v574
    %v607 = vunpack.c.l.b16 %v575
    %v608 = vunpack.c.l.b16 %v576
    %v609 = vunpack.c.l.b16 %v577
    %v610 = vunpack.c.l.b16 %v578
    %v611 = vunpack.c.l.b16 %v579
    %v612 = vpack.c.b16 %v597, %v596
    %v613 = vpack.c.b16 %v599, %v598
    %v614 = vpack.c.b16 %v601, %v600
    %v615 = vpack.c.b16 %v603, %v602
    %v616 = vpack.c.b16 %v605, %v604
    %v617 = vpack.c.b16 %v607, %v606
    %v618 = vpack.c.b16 %v609, %v608
    %v619 = vpack.c.b16 %v611, %v610
    %628 = vmatprep.subr.bf16.mxu0 0
    %629 = vmatpush1.bf16.msra.mxu0 %v619
    %630 = vmatprep.subr.bf16.mxu0 0
    %631 = vmatpush1.bf16.msra.mxu0 %v618
    %632 = vmatprep.subr.bf16.mxu0 0
    %633 = vmatpush1.bf16.msra.mxu0 %v617
    %634 = vmatprep.subr.bf16.mxu0 0
    %635 = vmatpush1.bf16.msra.mxu0 %v616
    %636 = vmatprep.subr.bf16.mxu0 0
    %637 = vmatpush1.bf16.msra.mxu0 %v615
    %638 = vmatprep.subr.bf16.mxu0 0
    %639 = vmatpush1.bf16.msra.mxu0 %v614
    %640 = vmatprep.subr.bf16.mxu0 0
    %641 = vmatpush1.bf16.msra.mxu0 %v613
    %642 = vmatprep.subr.bf16.mxu0 0
    %643 = vmatpush1.bf16.msra.mxu0 %v612
    %644 = vmatprep.subr.bf16.mxu0 0
    %645 = vmatpush2.bf16.msra.mxu0 0
    %646 = vmatprep.subr.bf16.mxu0 0
    %647 = vmatpush2.bf16.msra.mxu0 0
    %648 = vmatprep.subr.bf16.mxu0 0
    %649 = vmatpush2.bf16.msra.mxu0 0
    %650 = vmatprep.subr.bf16.mxu0 0
    %651 = vmatpush2.bf16.msra.mxu0 0
    %652 = vmatprep.subr.bf16.mxu0 0
    %653 = vmatpush2.bf16.msra.mxu0 0
    %654 = vmatprep.subr.bf16.mxu0 0
    %655 = vmatpush2.bf16.msra.mxu0 0
    %656 = vmatprep.subr.bf16.mxu0 0
    %657 = vmatpush2.bf16.msra.mxu0 0
    %658 = vmatprep.subr.bf16.mxu0 0
    %659 = vmatpush2.bf16.msra.mxu0 0
    %660 = vmatprep.mubr.bf16.mxu0 0
    %661 = vmatmul.mubr.bf16.gmra.mxu0 %v510
    %v662 = vpop.f32.mrf.mxu0
    %v663 = vadd.f32 0.0, %v662
    %v664 = vpop.f32.mrf.mxu0
    %v665 = vpop.f32.mrf.mxu0
    %v666 = vpop.f32.mrf.mxu0
    %667 = vdwg.mxu0
    %v668 = vpack.c.bf16 %v563, %v563
    %v669 = vpack.c.bf16 %v663, %v663
    %v671 = vsel %vm552, %v668, 0
    %vm673 = vcmask 1043456
    %v675 = vsel %vm673, %v669, 0
    %677 = vmatprep.subr.bf16.mxu0 0
    %678 = vmatpush1.bf16.msra.mxu0 0
    %679 = vmatprep.subr.bf16.mxu0 0
    %680 = vmatpush1.bf16.msra.mxu0 0
    %681 = vmatprep.subr.bf16.mxu0 0
    %682 = vmatpush1.bf16.msra.mxu0 0
    %683 = vmatprep.subr.bf16.mxu0 0
    %684 = vmatpush1.bf16.msra.mxu0 0
    %685 = vmatprep.subr.bf16.mxu0 0
    %686 = vmatpush1.bf16.msra.mxu0 0
    %687 = vmatprep.subr.bf16.mxu0 0
    %688 = vmatpush1.bf16.msra.mxu0 0
    %689 = vmatprep.subr.bf16.mxu0 0
    %690 = vmatpush1.bf16.msra.mxu0 0
    %691 = vmatprep.subr.bf16.mxu0 0
    %692 = vmatpush1.bf16.msra.mxu0 %v675
    %693 = vmatprep.subr.bf16.mxu0 0
    %694 = vmatpush2.bf16.msra.mxu0 0
    %695 = vmatprep.subr.bf16.mxu0 0
    %696 = vmatpush2.bf16.msra.mxu0 0
    %697 = vmatprep.subr.bf16.mxu0 0
    %698 = vmatpush2.bf16.msra.mxu0 0
    %699 = vmatprep.subr.bf16.mxu0 0
    %700 = vmatpush2.bf16.msra.mxu0 0
    %701 = vmatprep.subr.bf16.mxu0 0
    %702 = vmatpush2.bf16.msra.mxu0 0
    %703 = vmatprep.subr.bf16.mxu0 0
    %704 = vmatpush2.bf16.msra.mxu0 0
    %705 = vmatprep.subr.bf16.mxu0 0
    %706 = vmatpush2.bf16.msra.mxu0 0
    %707 = vmatprep.subr.bf16.mxu0 0
    %708 = vmatpush2.bf16.msra.mxu0 0
    %709 = vmatprep.mubr.bf16.mxu0 0
    %710 = vmatmul.mubr.bf16.gmra.mxu0 %v671
    %v711 = vpop.f32.mrf.mxu0
    %v712 = vadd.f32 %v400, %v711
    %v713 = vpop.f32.mrf.mxu0
    %v714 = vpop.f32.mrf.mxu0
    %v715 = vpop.f32.mrf.mxu0
    %716 = vdwg.mxu0
    %v717 = vmax.f32 %v712, 0.0
    %v718 = vld [vmem:[#allocation7 + $0x140] sm:$0xf]
    %v719 = vld [vmem:[#allocation7 + $0x144] sm:$0xf]
    %v720 = vld [vmem:[#allocation7 + $0x148] sm:$0xf]
    %v721 = vld [vmem:[#allocation7 + $0x14c] sm:$0xf]
    %v722 = vld [vmem:[#allocation7 + $0x150] sm:$0xf]
    %v723 = vld [vmem:[#allocation7 + $0x154] sm:$0xf]
    %v724 = vld [vmem:[#allocation7 + $0x158] sm:$0xf]
    %v725 = vld [vmem:[#allocation7 + $0x15c] sm:$0xf]
    %v726 = vld [vmem:[#allocation7 + $0x160] sm:$0xf]
    %v727 = vld [vmem:[#allocation7 + $0x164] sm:$0xf]
    %v728 = vld [vmem:[#allocation7 + $0x168] sm:$0xf]
    %v729 = vld [vmem:[#allocation7 + $0x16c] sm:$0xf]
    %v730 = vld [vmem:[#allocation7 + $0x170] sm:$0xf]
    %v731 = vld [vmem:[#allocation7 + $0x174] sm:$0xf]
    %v732 = vld [vmem:[#allocation7 + $0x178] sm:$0xf]
    %v733 = vld [vmem:[#allocation7 + $0x17c] sm:$0xf]
    %v734 = vld [vmem:[#allocation7 + $0x180] sm:$0xf]
    %v735 = vld [vmem:[#allocation7 + $0x184] sm:$0xf]
    %v736 = vld [vmem:[#allocation7 + $0x188] sm:$0xf]
    %v737 = vld [vmem:[#allocation7 + $0x18c] sm:$0xf]
    %v738 = vld [vmem:[#allocation7 + $0x190] sm:$0xf]
    %v739 = vld [vmem:[#allocation7 + $0x194] sm:$0xf]
    %v740 = vld [vmem:[#allocation7 + $0x198] sm:$0xf]
    %v741 = vld [vmem:[#allocation7 + $0x19c] sm:$0xf]
    %v742 = vld [vmem:[#allocation7 + $0x1a0] sm:$0xf]
    %v743 = vld [vmem:[#allocation7 + $0x1a4] sm:$0xf]
    %v744 = vld [vmem:[#allocation7 + $0x1a8] sm:$0xf]
    %v745 = vld [vmem:[#allocation7 + $0x1ac] sm:$0xf]
    %v746 = vld [vmem:[#allocation7 + $0x1b0] sm:$0xf]
    %v747 = vld [vmem:[#allocation7 + $0x1b4] sm:$0xf]
    %v748 = vld [vmem:[#allocation7 + $0x1b8] sm:$0xf]
    %v749 = vld [vmem:[#allocation7 + $0x1bc] sm:$0xf]
    %v750 = vadd.f32 %v717, %v509
    %v751 = vpack.c.bf16 %v750, %v750
    %v752 = vpack.c.bf16 %v291, %v291
    %v769 = vunpack.c.l.b16 %v734
    %v770 = vunpack.c.l.b16 %v735
    %v771 = vunpack.c.l.b16 %v736
    %v772 = vunpack.c.l.b16 %v737
    %v773 = vunpack.c.l.b16 %v738
    %v774 = vunpack.c.l.b16 %v739
    %v775 = vunpack.c.l.b16 %v740
    %v776 = vunpack.c.l.b16 %v741
    %v777 = vunpack.c.l.b16 %v742
    %v778 = vunpack.c.l.b16 %v743
    %v779 = vunpack.c.l.b16 %v744
    %v780 = vunpack.c.l.b16 %v745
    %v781 = vunpack.c.l.b16 %v746
    %v782 = vunpack.c.l.b16 %v747
    %v783 = vunpack.c.l.b16 %v748
    %v784 = vunpack.c.l.b16 %v749
    %v785 = vpack.c.b16 %v770, %v769
    %v786 = vpack.c.b16 %v772, %v771
    %v787 = vpack.c.b16 %v774, %v773
    %v788 = vpack.c.b16 %v776, %v775
    %v789 = vpack.c.b16 %v778, %v777
    %v790 = vpack.c.b16 %v780, %v779
    %v791 = vpack.c.b16 %v782, %v781
    %v792 = vpack.c.b16 %v784, %v783
    %801 = vmatprep.subr.bf16.mxu0 0
    %802 = vmatpush1.bf16.msra.mxu0 %v792
    %803 = vmatprep.subr.bf16.mxu0 0
    %804 = vmatpush1.bf16.msra.mxu0 %v791
    %805 = vmatprep.subr.bf16.mxu0 0
    %806 = vmatpush1.bf16.msra.mxu0 %v790
    %807 = vmatprep.subr.bf16.mxu0 0
    %808 = vmatpush1.bf16.msra.mxu0 %v789
    %809 = vmatprep.subr.bf16.mxu0 0
    %810 = vmatpush1.bf16.msra.mxu0 %v788
    %811 = vmatprep.subr.bf16.mxu0 0
    %812 = vmatpush1.bf16.msra.mxu0 %v787
    %813 = vmatprep.subr.bf16.mxu0 0
    %814 = vmatpush1.bf16.msra.mxu0 %v786
    %815 = vmatprep.subr.bf16.mxu0 0
    %816 = vmatpush1.bf16.msra.mxu0 %v785
    %817 = vmatprep.subr.bf16.mxu0 0
    %818 = vmatpush2.bf16.msra.mxu0 0
    %819 = vmatprep.subr.bf16.mxu0 0
    %820 = vmatpush2.bf16.msra.mxu0 0
    %821 = vmatprep.subr.bf16.mxu0 0
    %822 = vmatpush2.bf16.msra.mxu0 0
    %823 = vmatprep.subr.bf16.mxu0 0
    %824 = vmatpush2.bf16.msra.mxu0 0
    %825 = vmatprep.subr.bf16.mxu0 0
    %826 = vmatpush2.bf16.msra.mxu0 0
    %827 = vmatprep.subr.bf16.mxu0 0
    %828 = vmatpush2.bf16.msra.mxu0 0
    %829 = vmatprep.subr.bf16.mxu0 0
    %830 = vmatpush2.bf16.msra.mxu0 0
    %831 = vmatprep.subr.bf16.mxu0 0
    %832 = vmatpush2.bf16.msra.mxu0 0
    %833 = vmatprep.mubr.bf16.mxu0 0
    %834 = vmatmul.mubr.bf16.gmra.mxu0 %v752
    %v835 = vpop.f32.mrf.mxu0
    %v836 = vadd.f32 0.0, %v835
    %v837 = vpop.f32.mrf.mxu0
    %v838 = vpop.f32.mrf.mxu0
    %v839 = vpop.f32.mrf.mxu0
    %840 = vdwg.mxu0
    %v857 = vunpack.c.l.b16 %v718
    %v858 = vunpack.c.l.b16 %v719
    %v859 = vunpack.c.l.b16 %v720
    %v860 = vunpack.c.l.b16 %v721
    %v861 = vunpack.c.l.b16 %v722
    %v862 = vunpack.c.l.b16 %v723
    %v863 = vunpack.c.l.b16 %v724
    %v864 = vunpack.c.l.b16 %v725
    %v865 = vunpack.c.l.b16 %v726
    %v866 = vunpack.c.l.b16 %v727
    %v867 = vunpack.c.l.b16 %v728
    %v868 = vunpack.c.l.b16 %v729
    %v869 = vunpack.c.l.b16 %v730
    %v870 = vunpack.c.l.b16 %v731
    %v871 = vunpack.c.l.b16 %v732
    %v872 = vunpack.c.l.b16 %v733
    %v873 = vpack.c.b16 %v858, %v857
    %v874 = vpack.c.b16 %v860, %v859
    %v875 = vpack.c.b16 %v862, %v861
    %v876 = vpack.c.b16 %v864, %v863
    %v877 = vpack.c.b16 %v866, %v865
    %v878 = vpack.c.b16 %v868, %v867
    %v879 = vpack.c.b16 %v870, %v869
    %v880 = vpack.c.b16 %v872, %v871
    %889 = vmatprep.subr.bf16.mxu0 0
    %890 = vmatpush1.bf16.msra.mxu0 %v880
    %891 = vmatprep.subr.bf16.mxu0 0
    %892 = vmatpush1.bf16.msra.mxu0 %v879
    %893 = vmatprep.subr.bf16.mxu0 0
    %894 = vmatpush1.bf16.msra.mxu0 %v878
    %895 = vmatprep.subr.bf16.mxu0 0
    %896 = vmatpush1.bf16.msra.mxu0 %v877
    %897 = vmatprep.subr.bf16.mxu0 0
    %898 = vmatpush1.bf16.msra.mxu0 %v876
    %899 = vmatprep.subr.bf16.mxu0 0
    %900 = vmatpush1.bf16.msra.mxu0 %v875
    %901 = vmatprep.subr.bf16.mxu0 0
    %902 = vmatpush1.bf16.msra.mxu0 %v874
    %903 = vmatprep.subr.bf16.mxu0 0
    %904 = vmatpush1.bf16.msra.mxu0 %v873
    %905 = vmatprep.subr.bf16.mxu0 0
    %906 = vmatpush2.bf16.msra.mxu0 0
    %907 = vmatprep.subr.bf16.mxu0 0
    %908 = vmatpush2.bf16.msra.mxu0 0
    %909 = vmatprep.subr.bf16.mxu0 0
    %910 = vmatpush2.bf16.msra.mxu0 0
    %911 = vmatprep.subr.bf16.mxu0 0
    %912 = vmatpush2.bf16.msra.mxu0 0
    %913 = vmatprep.subr.bf16.mxu0 0
    %914 = vmatpush2.bf16.msra.mxu0 0
    %915 = vmatprep.subr.bf16.mxu0 0
    %916 = vmatpush2.bf16.msra.mxu0 0
    %917 = vmatprep.subr.bf16.mxu0 0
    %918 = vmatpush2.bf16.msra.mxu0 0
    %919 = vmatprep.subr.bf16.mxu0 0
    %920 = vmatpush2.bf16.msra.mxu0 0
    %921 = vmatprep.mubr.bf16.mxu0 0
    %922 = vmatmul.mubr.bf16.gmra.mxu0 %v751
    %v923 = vpop.f32.mrf.mxu0
    %v924 = vadd.f32 %v836, %v923
    %v925 = vpop.f32.mrf.mxu0
    %v926 = vpop.f32.mrf.mxu0
    %v927 = vpop.f32.mrf.mxu0
    %928 = vdwg.mxu0
    %v929 = vlaneseq
    %v930 = vshrl.u32 %v929, 7
    %v931 = vsub.s32 4, %v930
    %v932 = vrot.slane %v72, %v931
    %v933 = vadd.f32 %v924, %v932
    %934 = vst [vmem:[#allocation10] sm:$0xff] %v933
    // Predicated region
    $region34: #{tpu_custom_call.1} parent=1 // pred_check
      _
    $region35: #{tpu_custom_call.1} parent=1 // pred_check_branch
      %936 = sbr.rel (0) target = $region37
    $region36: #{tpu_custom_call.1} parent=1 // pred_region
      %s938 = ssub.s32 128, 128
      %939 = vsyncadd [#allocation4], %s938
      %s941 = sshll.u32 [#allocation10], 4
      %s942 = int_to_ptr.vmem [resolvable:$true] %s941
      %944 = dma.vmem_to_hbm [thread:$0]  %s942, 128, %s4, [#allocation4]
    $region37: #{tpu_custom_call.1} parent=1 // pred_fallthru
      _
    // Predicated region
    $region38: #{tpu_custom_call.1} parent=1 // pred_check
      _
    $region39: #{tpu_custom_call.1} parent=1 // pred_check_branch
      %946 = sbr.rel (0) target = $region41
    $region40: #{tpu_custom_call.1} parent=1 // pred_region
      %947 = dma.done [#allocation4], 128
    $region41: #{tpu_custom_call.1} parent=1 // pred_fallthru
      _
    %948 = vsyncpa [#allocation3], 1
    %949 = vsyncpa [#allocation6], 1
    %950 = vsyncpa [#allocation9], 1
    %951 = vsyncpa [#allocation4], 1

</llo_original>
